<compile_context>
chip_gen: v7x
topology: tpu7x:2x2x1
jax: 0.10.0
libtpu: 0.0.40
codegen_flags: <defaults>
</compile_context>

<pallas_src>
import jax
import jax.numpy as jnp
from jax.experimental import pallas as pl
from jax.experimental.pallas import tpu as pltpu

EPS = 1e-5  # PyTorch LayerNorm default


# ---------------------------------------------------------------------------
# Pallas kernel: full Channelatt forward for a tile of TB batch elements.
# ---------------------------------------------------------------------------
def channelatt_kernel(
    x_ref,       # (TB, C, HWp)   input activations (lane-padded spatial)
    basis_ref,   # (2, HWp)       DCT frequency basis rows (zero padded)
    pvec_ref,    # (8, C)         rows: wmax, wdct, ln1_w, ln1_b, b2, lc_b, sel0, sel1
    mvec_ref,    # (3, mid)       rows: b1, ln2_w, ln2_b
    wlc_t_ref,   # (C, C)         conv1d(k=3, pad=1) Toeplitz matrix, transposed
    w1t_ref,     # (C, mid)       gct conv1 weight, transposed
    w2t_ref,     # (mid, C)       gct conv2 weight, transposed
    out_ref,     # (TB, C, HWp)
):
    x = x_ref[...]                                   # (TB, C, HWp)
    basis = basis_ref[...]                           # (2, HWp) f32
    pvec = pvec_ref[...]                             # (8, C)   f32
    mvec = mvec_ref[...]                             # (3, mid) f32

    wmax = pvec[0:1, :]
    wdct = pvec[1:2, :]
    ln1_w = pvec[2:3, :]
    ln1_b = pvec[3:4, :]
    b2 = pvec[4:5, :]
    lcb = pvec[5:6, :]
    sel0 = pvec[6:7, :]
    sel1 = pvec[7:8, :]

    # --- spatial reductions (hot path over the full block) ---
    m = jnp.max(x, axis=2).astype(jnp.float32)                       # (TB, C)
    b0 = basis[0:1, :][:, None, :]                                   # (1, 1, HWp)
    b1 = basis[1:2, :][:, None, :]
    d0 = jnp.sum(x * b0, axis=2).astype(jnp.float32)                 # (TB, C)
    d1 = jnp.sum(x * b1, axis=2).astype(jnp.float32)                 # (TB, C)
    d = sel0 * d0 + sel1 * d1                                        # (TB, C)

    # --- per-channel gating stats ---
    x_sc = wmax * m + wdct * d                                       # (TB, C)

    # conv1d over the channel dim (k=3, pad=1) as a batched Toeplitz matmul
    x_lc = jnp.dot(x_sc, wlc_t_ref[...],
                   preferred_element_type=jnp.float32) + lcb         # (TB, C)

    # LayerNorm([C, 1]) over the channel axis
    s = x_sc + x_lc
    mu = jnp.mean(s, axis=1, keepdims=True)
    var = jnp.mean((s - mu) ** 2, axis=1, keepdims=True)
    s_n = (s - mu) * jax.lax.rsqrt(var + EPS)
    s_n = s_n * ln1_w + ln1_b                                        # (TB, C)

    # gct: 1x1 conv -> LayerNorm([mid,1,1]) -> ReLU -> 1x1 conv
    y = jnp.dot(s_n, w1t_ref[...],
                preferred_element_type=jnp.float32) + mvec[0:1, :]   # (TB, mid)
    mu2 = jnp.mean(y, axis=1, keepdims=True)
    var2 = jnp.mean((y - mu2) ** 2, axis=1, keepdims=True)
    y = (y - mu2) * jax.lax.rsqrt(var2 + EPS)
    y = y * mvec[1:2, :] + mvec[2:3, :]
    y = jnp.maximum(y, 0.0)
    att = jnp.dot(y, w2t_ref[...],
                  preferred_element_type=jnp.float32) + b2           # (TB, C)

    # residual broadcast add over spatial
    out_ref[...] = (x + att.astype(x.dtype)[:, :, None]).astype(out_ref.dtype)


# ---------------------------------------------------------------------------
# Glue (plain JAX): DCT basis, Toeplitz conv matrix, parameter packing.
# ---------------------------------------------------------------------------
def build_dct_basis(C, H, W, bnumfre=2):
    """FcaNet-style DCT pooling, factored: basis (F, H*W) + one-hot select (F, C)."""
    freqs = [(0, 0), (0, 1), (1, 0), (1, 1)][:bnumfre]
    h = jnp.arange(H, dtype=jnp.float32)
    w = jnp.arange(W, dtype=jnp.float32)
    rows = []
    for (u, v) in freqs:
        bh = jnp.cos(jnp.pi * u * (h + 0.5) / H)
        bw = jnp.cos(jnp.pi * v * (w + 0.5) / W)
        rows.append((bh[:, None] * bw[None, :]).reshape(-1))
    basis = jnp.stack(rows, axis=0)                                  # (F, HW)
    cpart = max(C // bnumfre, 1)
    fidx = jnp.minimum(jnp.arange(C) // cpart, bnumfre - 1)
    sel = jax.nn.one_hot(fidx, bnumfre, dtype=jnp.float32).T         # (F, C)
    return basis, sel


def conv1d_toeplitz(k, C):
    """Banded (C, C) matrix equivalent to Conv1d(1,1,k=3,pad=1) along length C."""
    idx = jnp.arange(C)
    Wm = jnp.zeros((C, C), jnp.float32)
    Wm = Wm.at[idx[1:], idx[:-1]].set(k[0])
    Wm = Wm.at[idx, idx].set(k[1])
    Wm = Wm.at[idx[:-1], idx[1:]].set(k[2])
    return Wm


def init_params(key, C, reduction=4):
    mid = int(C * (1.0 / reduction))
    ks = jax.random.split(key, 6)
    return {
        "wmax": jnp.full((C, 1), 0.5, jnp.float32),
        "wdct": jnp.full((C, 1), 0.5, jnp.float32),
        "lc_k": 0.2 * jax.random.normal(ks[0], (3,), jnp.float32),
        "lc_b": 0.1 * jax.random.normal(ks[1], (1, 1), jnp.float32),
        "ln1_w": jnp.ones((C, 1), jnp.float32),
        "ln1_b": jnp.zeros((C, 1), jnp.float32),
        "w1": 0.2 * jax.random.normal(ks[2], (mid, C), jnp.float32),
        "b1": 0.1 * jax.random.normal(ks[3], (mid, 1), jnp.float32),
        "ln2_w": jnp.ones((mid, 1), jnp.float32),
        "ln2_b": jnp.zeros((mid, 1), jnp.float32),
        "w2": 0.2 * jax.random.normal(ks[4], (C, mid), jnp.float32),
        "b2": 0.1 * jax.random.normal(ks[5], (C, 1), jnp.float32),
    }


_BLOCK_VMEM_BUDGET = 40 * 1024 * 1024  # for 2x in + 2x out double-buffered blocks


def scsp_forward(x, params, bnumfre=2):
    assert bnumfre == 2, "Channelatt uses DctCFea(bnumfre=2)"
    B, C, H, W = x.shape
    HW = H * W
    HWp = ((HW + 127) // 128) * 128            # lane-dense spatial (128 multiple)
    itemsize = jnp.dtype(x.dtype).itemsize

    # ----- choose batch tile TB: as large as fits the VMEM block budget -----
    per_img = C * HWp * itemsize
    tb = max(1, min(B, 128, _BLOCK_VMEM_BUDGET // max(1, 4 * per_img)))
    if B >= 4:
        # keep >= 2 grid steps so the parallel batch axis can split across cores
        tb = min(tb, (B + 1) // 2)
    Bp = ((B + tb - 1) // tb) * tb

    # ----- pad spatial (max-neutral) and batch -----
    x2 = x.reshape(B, C, HW)
    pad_val = float(jnp.finfo(x.dtype).min)     # does not affect the max pool
    x2 = jnp.pad(x2, ((0, 0), (0, 0), (0, HWp - HW)), constant_values=pad_val)
    x2 = jnp.pad(x2, ((0, Bp - B), (0, 0), (0, 0)))

    # ----- DCT basis (factored) and packed parameters -----
    basis, sel = build_dct_basis(C, H, W, bnumfre)
    F = basis.shape[0]
    basis_p = jnp.pad(basis, ((0, 0), (0, HWp - HW)))          # zero pad -> sums exact

    mid = params["w1"].shape[0]
    ones_c = jnp.ones((C,), jnp.float32)
    pvec = jnp.stack([
        params["wmax"][:, 0], params["wdct"][:, 0],
        params["ln1_w"][:, 0], params["ln1_b"][:, 0],
        params["b2"][:, 0],
        params["lc_b"][0, 0] * ones_c,
        sel[0], sel[1],
    ], axis=0)                                                 # (8, C)
    mvec = jnp.stack([params["b1"][:, 0], params["ln2_w"][:, 0],
                      params["ln2_b"][:, 0]], axis=0)          # (3, mid)
    wlc_t = conv1d_toeplitz(params["lc_k"], C).T               # (C, C)
    w1t = params["w1"].T                                       # (C, mid)
    w2t = params["w2"].T                                       # (mid, C)

    # ----- VMEM limit: 2x in + 2x out blocks + resident params + headroom -----
    block_bytes = tb * C * HWp * itemsize
    param_bytes = 4 * (basis_p.size + pvec.size + mvec.size +
                       wlc_t.size + w1t.size + w2t.size)
    need = 4 * block_bytes + param_bytes + (2 << 20)
    vmem_limit = int(min(max(need, 32 << 20), 64 << 20))

    block = (tb, C, HWp)
    out = pl.pallas_call(
        channelatt_kernel,
        out_shape=jax.ShapeDtypeStruct((Bp, C, HWp), x.dtype),
        grid_spec=pltpu.PrefetchScalarGridSpec(
            num_scalar_prefetch=0,
            grid=(Bp // tb,),
            in_specs=[
                pl.BlockSpec(block, lambda b: (b, 0, 0)),
                pl.BlockSpec((F, HWp), lambda b: (0, 0)),
                pl.BlockSpec((8, C), lambda b: (0, 0)),
                pl.BlockSpec((3, mid), lambda b: (0, 0)),
                pl.BlockSpec((C, C), lambda b: (0, 0)),
                pl.BlockSpec((C, mid), lambda b: (0, 0)),
                pl.BlockSpec((mid, C), lambda b: (0, 0)),
            ],
            out_specs=pl.BlockSpec(block, lambda b: (b, 0, 0)),
        ),
        compiler_params=pltpu.CompilerParams(
            dimension_semantics=("parallel",),
            vmem_limit_bytes=vmem_limit,
        ),
    )(x2, basis_p, pvec, mvec, wlc_t, w1t, w2t)

    return out[:B, :, :HW].reshape(B, C, H, W)


# ---------------------------------------------------------------------------
# Pure-JAX reference (same math, no Pallas) for verification.
# ---------------------------------------------------------------------------
def scsp_reference(x, params, bnumfre=2):
    B, C, H, W = x.shape
    HW = H * W
    x2 = x.reshape(B, C, HW)
    basis, sel = build_dct_basis(C, H, W, bnumfre)
    dctw = sel.T @ basis                                       # (C, HW)
    m = jnp.max(x2, axis=-1)                                   # (B, C)
    d = jnp.sum(x2 * dctw[None], axis=-1)                      # (B, C)
    x_sc = params["wmax"][:, 0][None] * m + params["wdct"][:, 0][None] * d
    wlc = conv1d_toeplitz(params["lc_k"], C)
    x_lc = x_sc @ wlc.T + params["lc_b"][0, 0]
    s = x_sc + x_lc
    mu = jnp.mean(s, -1, keepdims=True)
    var = jnp.mean((s - mu) ** 2, -1, keepdims=True)
    s_n = (s - mu) / jnp.sqrt(var + EPS)
    s_n = s_n * params["ln1_w"][:, 0][None] + params["ln1_b"][:, 0][None]
    y = s_n @ params["w1"].T + params["b1"][:, 0][None]
    mu2 = jnp.mean(y, -1, keepdims=True)
    var2 = jnp.mean((y - mu2) ** 2, -1, keepdims=True)
    y = (y - mu2) / jnp.sqrt(var2 + EPS)
    y = y * params["ln2_w"][:, 0][None] + params["ln2_b"][:, 0][None]
    y = jnp.maximum(y, 0.0)
    att = y @ params["w2"].T + params["b2"][:, 0][None]
    return x + att[:, :, None, None]


if __name__ == "__main__":
    root = jax.random.PRNGKey(0)
    # Primary small case, plus one ragged case exercising HW / batch padding.
    cases = [(2, 8, 16, 16), (3, 8, 7, 9)]
    for i, (B, C, H, W) in enumerate(cases):
        kx, kp = jax.random.split(jax.random.fold_in(root, i))
        x = jax.random.normal(kx, (B, C, H, W), dtype=jnp.float32)
        params = init_params(kp, C, reduction=4)

        out = scsp_forward(x, params)
        jax.block_until_ready(out)

        ref = scsp_reference(x, params)
        assert out.shape == (B, C, H, W)
        err = float(jnp.max(jnp.abs(out - ref)))
        assert jnp.allclose(out, ref, atol=1e-3, rtol=1e-3), err

    print("KERNEL_OK")
</pallas_src>

<mosaic_0001>
module attributes {stable_mosaic.version = 11 : i64} {
  func.func @channelatt_kernel(%arg0: i32, %arg1: memref<2x8x256xf32, #tpu.memory_space<vmem>>, %arg2: memref<2x256xf32, #tpu.memory_space<vmem>>, %arg3: memref<8x8xf32, #tpu.memory_space<vmem>>, %arg4: memref<3x2xf32, #tpu.memory_space<vmem>>, %arg5: memref<8x8xf32, #tpu.memory_space<vmem>>, %arg6: memref<8x2xf32, #tpu.memory_space<vmem>>, %arg7: memref<2x8xf32, #tpu.memory_space<vmem>>, %arg8: memref<2x8x256xf32, #tpu.memory_space<vmem>>) attributes {dimension_semantics = [#tpu.dimension_semantics<parallel>], iteration_bounds = array<i64: 1>, scalar_prefetch = 0 : i64, scratch_operands = 0 : i64, tpu.core_type = #tpu.core_type<tc>, window_params = [{transform_indices = @transform_0, window_bounds = array<i64: 2, 8, 256>}, {pipeline_mode = #tpu.pipeline_mode<synchronous>, transform_indices = @transform_1, window_bounds = array<i64: 2, 256>}, {pipeline_mode = #tpu.pipeline_mode<synchronous>, transform_indices = @transform_2, window_bounds = array<i64: 8, 8>}, {pipeline_mode = #tpu.pipeline_mode<synchronous>, transform_indices = @transform_3, window_bounds = array<i64: 3, 2>}, {pipeline_mode = #tpu.pipeline_mode<synchronous>, transform_indices = @transform_4, window_bounds = array<i64: 8, 8>}, {pipeline_mode = #tpu.pipeline_mode<synchronous>, transform_indices = @transform_5, window_bounds = array<i64: 8, 2>}, {pipeline_mode = #tpu.pipeline_mode<synchronous>, transform_indices = @transform_6, window_bounds = array<i64: 2, 8>}, {transform_indices = @transform_7, window_bounds = array<i64: 2, 8, 256>}]} {
    %c0 = arith.constant 0 : index
    %c0_0 = arith.constant 0 : index
    %c0_1 = arith.constant 0 : index
    %0 = vector.load %arg1[%c0, %c0_0, %c0_1] : memref<2x8x256xf32, #tpu.memory_space<vmem>>, vector<2x8x256xf32>
    %c0_2 = arith.constant 0 : index
    %c0_3 = arith.constant 0 : index
    %1 = vector.load %arg2[%c0_2, %c0_3] : memref<2x256xf32, #tpu.memory_space<vmem>>, vector<2x256xf32>
    %c0_4 = arith.constant 0 : index
    %c0_5 = arith.constant 0 : index
    %2 = vector.load %arg3[%c0_4, %c0_5] : memref<8x8xf32, #tpu.memory_space<vmem>>, vector<8x8xf32>
    %c0_6 = arith.constant 0 : index
    %c0_7 = arith.constant 0 : index
    %3 = vector.load %arg4[%c0_6, %c0_7] : memref<3x2xf32, #tpu.memory_space<vmem>>, vector<3x2xf32>
    %4 = vector.extract_strided_slice %2 {offsets = [0, 0], sizes = [1, 8], strides = [1, 1]} : vector<8x8xf32> to vector<1x8xf32>
    %5 = vector.extract_strided_slice %2 {offsets = [1, 0], sizes = [1, 8], strides = [1, 1]} : vector<8x8xf32> to vector<1x8xf32>
    %6 = vector.extract_strided_slice %2 {offsets = [2, 0], sizes = [1, 8], strides = [1, 1]} : vector<8x8xf32> to vector<1x8xf32>
    %7 = vector.extract_strided_slice %2 {offsets = [3, 0], sizes = [1, 8], strides = [1, 1]} : vector<8x8xf32> to vector<1x8xf32>
    %8 = vector.extract_strided_slice %2 {offsets = [4, 0], sizes = [1, 8], strides = [1, 1]} : vector<8x8xf32> to vector<1x8xf32>
    %9 = vector.extract_strided_slice %2 {offsets = [5, 0], sizes = [1, 8], strides = [1, 1]} : vector<8x8xf32> to vector<1x8xf32>
    %10 = vector.extract_strided_slice %2 {offsets = [6, 0], sizes = [1, 8], strides = [1, 1]} : vector<8x8xf32> to vector<1x8xf32>
    %11 = vector.extract_strided_slice %2 {offsets = [7, 0], sizes = [1, 8], strides = [1, 1]} : vector<8x8xf32> to vector<1x8xf32>
    %cst = arith.constant dense<0xFF800000> : vector<2x8xf32>
    %12 = vector.multi_reduction <maximumf>, %0, %cst [2] : vector<2x8x256xf32> to vector<2x8xf32>
    %13 = vector.extract_strided_slice %1 {offsets = [0, 0], sizes = [1, 256], strides = [1, 1]} : vector<2x256xf32> to vector<1x256xf32>
    %14 = vector.shape_cast %13 : vector<1x256xf32> to vector<1x1x256xf32>
    %15 = vector.extract_strided_slice %1 {offsets = [1, 0], sizes = [1, 256], strides = [1, 1]} : vector<2x256xf32> to vector<1x256xf32>
    %16 = vector.shape_cast %15 : vector<1x256xf32> to vector<1x1x256xf32>
    %17 = vector.broadcast %14 : vector<1x1x256xf32> to vector<2x8x256xf32>
    %18 = arith.mulf %0, %17 : vector<2x8x256xf32>
    %cst_8 = arith.constant dense<0.000000e+00> : vector<2x8xf32>
    %19 = vector.multi_reduction <add>, %18, %cst_8 [2] : vector<2x8x256xf32> to vector<2x8xf32>
    %20 = vector.broadcast %16 : vector<1x1x256xf32> to vector<2x8x256xf32>
    %21 = arith.mulf %0, %20 : vector<2x8x256xf32>
    %cst_9 = arith.constant dense<0.000000e+00> : vector<2x8xf32>
    %22 = vector.multi_reduction <add>, %21, %cst_9 [2] : vector<2x8x256xf32> to vector<2x8xf32>
    %23 = vector.broadcast %10 : vector<1x8xf32> to vector<2x8xf32>
    %24 = arith.mulf %23, %19 : vector<2x8xf32>
    %25 = vector.broadcast %11 : vector<1x8xf32> to vector<2x8xf32>
    %26 = arith.mulf %25, %22 : vector<2x8xf32>
    %27 = arith.addf %24, %26 : vector<2x8xf32>
    %28 = vector.broadcast %4 : vector<1x8xf32> to vector<2x8xf32>
    %29 = arith.mulf %28, %12 : vector<2x8xf32>
    %30 = vector.broadcast %5 : vector<1x8xf32> to vector<2x8xf32>
    %31 = arith.mulf %30, %27 : vector<2x8xf32>
    %32 = arith.addf %29, %31 : vector<2x8xf32>
    %c0_10 = arith.constant 0 : index
    %c0_11 = arith.constant 0 : index
    %33 = vector.load %arg5[%c0_10, %c0_11] : memref<8x8xf32, #tpu.memory_space<vmem>>, vector<8x8xf32>
    %cst_12 = arith.constant dense<0.000000e+00> : vector<2x8xf32>
    %34 = tpu.matmul %32, %33, %cst_12 {dimension_numbers = #tpu.dot_dimension_numbers<[1], [0], [0], [1], [0, 0, 1, 1], [], []>} : vector<2x8xf32>, vector<8x8xf32>, vector<2x8xf32> -> vector<2x8xf32>
    %35 = vector.broadcast %9 : vector<1x8xf32> to vector<2x8xf32>
    %36 = arith.addf %34, %35 : vector<2x8xf32>
    %37 = arith.addf %32, %36 : vector<2x8xf32>
    %cst_13 = arith.constant dense<0.000000e+00> : vector<2xf32>
    %38 = vector.multi_reduction <add>, %37, %cst_13 [1] : vector<2x8xf32> to vector<2xf32>
    %39 = vector.shape_cast %38 : vector<2xf32> to vector<2x1xf32>
    %cst_14 = arith.constant 8.000000e+00 : f32
    %40 = vector.broadcast %cst_14 : f32 to vector<2x1xf32>
    %41 = arith.divf %39, %40 : vector<2x1xf32>
    %42 = vector.broadcast %41 : vector<2x1xf32> to vector<2x8xf32>
    %43 = arith.subf %37, %42 : vector<2x8xf32>
    %44 = arith.mulf %43, %43 : vector<2x8xf32>
    %cst_15 = arith.constant dense<0.000000e+00> : vector<2xf32>
    %45 = vector.multi_reduction <add>, %44, %cst_15 [1] : vector<2x8xf32> to vector<2xf32>
    %46 = vector.shape_cast %45 : vector<2xf32> to vector<2x1xf32>
    %cst_16 = arith.constant 8.000000e+00 : f32
    %47 = vector.broadcast %cst_16 : f32 to vector<2x1xf32>
    %48 = arith.divf %46, %47 : vector<2x1xf32>
    %49 = vector.broadcast %41 : vector<2x1xf32> to vector<2x8xf32>
    %50 = arith.subf %37, %49 : vector<2x8xf32>
    %cst_17 = arith.constant 9.99999974E-6 : f32
    %51 = vector.broadcast %cst_17 : f32 to vector<2x1xf32>
    %52 = arith.addf %48, %51 : vector<2x1xf32>
    %53 = math.rsqrt %52 : vector<2x1xf32>
    %54 = vector.broadcast %53 : vector<2x1xf32> to vector<2x8xf32>
    %55 = arith.mulf %50, %54 : vector<2x8xf32>
    %56 = vector.broadcast %6 : vector<1x8xf32> to vector<2x8xf32>
    %57 = arith.mulf %55, %56 : vector<2x8xf32>
    %58 = vector.broadcast %7 : vector<1x8xf32> to vector<2x8xf32>
    %59 = arith.addf %57, %58 : vector<2x8xf32>
    %c0_18 = arith.constant 0 : index
    %c0_19 = arith.constant 0 : index
    %60 = vector.load %arg6[%c0_18, %c0_19] : memref<8x2xf32, #tpu.memory_space<vmem>>, vector<8x2xf32>
    %cst_20 = arith.constant dense<0.000000e+00> : vector<2x2xf32>
    %61 = tpu.matmul %59, %60, %cst_20 {dimension_numbers = #tpu.dot_dimension_numbers<[1], [0], [0], [1], [0, 0, 1, 1], [], []>} : vector<2x8xf32>, vector<8x2xf32>, vector<2x2xf32> -> vector<2x2xf32>
    %62 = vector.extract_strided_slice %3 {offsets = [0, 0], sizes = [1, 2], strides = [1, 1]} : vector<3x2xf32> to vector<1x2xf32>
    %63 = vector.broadcast %62 : vector<1x2xf32> to vector<2x2xf32>
    %64 = arith.addf %61, %63 : vector<2x2xf32>
    %cst_21 = arith.constant dense<0.000000e+00> : vector<2xf32>
    %65 = vector.multi_reduction <add>, %64, %cst_21 [1] : vector<2x2xf32> to vector<2xf32>
    %66 = vector.shape_cast %65 : vector<2xf32> to vector<2x1xf32>
    %cst_22 = arith.constant 2.000000e+00 : f32
    %67 = vector.broadcast %cst_22 : f32 to vector<2x1xf32>
    %68 = arith.divf %66, %67 : vector<2x1xf32>
    %69 = vector.broadcast %68 : vector<2x1xf32> to vector<2x2xf32>
    %70 = arith.subf %64, %69 : vector<2x2xf32>
    %71 = arith.mulf %70, %70 : vector<2x2xf32>
    %cst_23 = arith.constant dense<0.000000e+00> : vector<2xf32>
    %72 = vector.multi_reduction <add>, %71, %cst_23 [1] : vector<2x2xf32> to vector<2xf32>
    %73 = vector.shape_cast %72 : vector<2xf32> to vector<2x1xf32>
    %cst_24 = arith.constant 2.000000e+00 : f32
    %74 = vector.broadcast %cst_24 : f32 to vector<2x1xf32>
    %75 = arith.divf %73, %74 : vector<2x1xf32>
    %76 = vector.broadcast %68 : vector<2x1xf32> to vector<2x2xf32>
    %77 = arith.subf %64, %76 : vector<2x2xf32>
    %cst_25 = arith.constant 9.99999974E-6 : f32
    %78 = vector.broadcast %cst_25 : f32 to vector<2x1xf32>
    %79 = arith.addf %75, %78 : vector<2x1xf32>
    %80 = math.rsqrt %79 : vector<2x1xf32>
    %81 = vector.broadcast %80 : vector<2x1xf32> to vector<2x2xf32>
    %82 = arith.mulf %77, %81 : vector<2x2xf32>
    %83 = vector.extract_strided_slice %3 {offsets = [1, 0], sizes = [1, 2], strides = [1, 1]} : vector<3x2xf32> to vector<1x2xf32>
    %84 = vector.broadcast %83 : vector<1x2xf32> to vector<2x2xf32>
    %85 = arith.mulf %82, %84 : vector<2x2xf32>
    %86 = vector.extract_strided_slice %3 {offsets = [2, 0], sizes = [1, 2], strides = [1, 1]} : vector<3x2xf32> to vector<1x2xf32>
    %87 = vector.broadcast %86 : vector<1x2xf32> to vector<2x2xf32>
    %88 = arith.addf %85, %87 : vector<2x2xf32>
    %cst_26 = arith.constant 0.000000e+00 : f32
    %89 = vector.broadcast %cst_26 : f32 to vector<2x2xf32>
    %90 = arith.maximumf %88, %89 : vector<2x2xf32>
    %c0_27 = arith.constant 0 : index
    %c0_28 = arith.constant 0 : index
    %91 = vector.load %arg7[%c0_27, %c0_28] : memref<2x8xf32, #tpu.memory_space<vmem>>, vector<2x8xf32>
    %cst_29 = arith.constant dense<0.000000e+00> : vector<2x8xf32>
    %92 = tpu.matmul %90, %91, %cst_29 {dimension_numbers = #tpu.dot_dimension_numbers<[1], [0], [0], [1], [0, 0, 1, 1], [], []>} : vector<2x2xf32>, vector<2x8xf32>, vector<2x8xf32> -> vector<2x8xf32>
    %93 = vector.broadcast %8 : vector<1x8xf32> to vector<2x8xf32>
    %94 = arith.addf %92, %93 : vector<2x8xf32>
    %95 = vector.shape_cast %94 : vector<2x8xf32> to vector<2x8x1xf32>
    %96 = vector.broadcast %95 : vector<2x8x1xf32> to vector<2x8x256xf32>
    %97 = arith.addf %0, %96 : vector<2x8x256xf32>
    %c0_30 = arith.constant 0 : index
    %c0_31 = arith.constant 0 : index
    %c0_32 = arith.constant 0 : index
    %98 = vector.load %arg8[%c0_30, %c0_31, %c0_32] : memref<2x8x256xf32, #tpu.memory_space<vmem>>, vector<2x8x256xf32>
    tpu.vector_store %arg8[%c0_30, %c0_31, %c0_32], %97 {strides = array<i32>} : memref<2x8x256xf32, #tpu.memory_space<vmem>>, vector<2x8x256xf32>,
    return
  }
  func.func @transform_0(%arg0: i32) -> (i32, i32, i32) {
    %c0_i32 = arith.constant 0 : i32
    %c0_i32_0 = arith.constant 0 : i32
    %c0_i32_1 = arith.constant 0 : i32
    return %arg0, %c0_i32, %c0_i32_0 : i32, i32, i32
  }
  func.func @transform_1(%arg0: i32) -> (i32, i32) {
    %c0_i32 = arith.constant 0 : i32
    %c0_i32_0 = arith.constant 0 : i32
    %c0_i32_1 = arith.constant 0 : i32
    return %c0_i32, %c0_i32_0 : i32, i32
  }
  func.func @transform_2(%arg0: i32) -> (i32, i32) {
    %c0_i32 = arith.constant 0 : i32
    %c0_i32_0 = arith.constant 0 : i32
    %c0_i32_1 = arith.constant 0 : i32
    return %c0_i32, %c0_i32_0 : i32, i32
  }
  func.func @transform_3(%arg0: i32) -> (i32, i32) {
    %c0_i32 = arith.constant 0 : i32
    %c0_i32_0 = arith.constant 0 : i32
    %c0_i32_1 = arith.constant 0 : i32
    return %c0_i32, %c0_i32_0 : i32, i32
  }
  func.func @transform_4(%arg0: i32) -> (i32, i32) {
    %c0_i32 = arith.constant 0 : i32
    %c0_i32_0 = arith.constant 0 : i32
    %c0_i32_1 = arith.constant 0 : i32
    return %c0_i32, %c0_i32_0 : i32, i32
  }
  func.func @transform_5(%arg0: i32) -> (i32, i32) {
    %c0_i32 = arith.constant 0 : i32
    %c0_i32_0 = arith.constant 0 : i32
    %c0_i32_1 = arith.constant 0 : i32
    return %c0_i32, %c0_i32_0 : i32, i32
  }
  func.func @transform_6(%arg0: i32) -> (i32, i32) {
    %c0_i32 = arith.constant 0 : i32
    %c0_i32_0 = arith.constant 0 : i32
    %c0_i32_1 = arith.constant 0 : i32
    return %c0_i32, %c0_i32_0 : i32, i32
  }
  func.func @transform_7(%arg0: i32) -> (i32, i32, i32) {
    %c0_i32 = arith.constant 0 : i32
    %c0_i32_0 = arith.constant 0 : i32
    %c0_i32_1 = arith.constant 0 : i32
    return %arg0, %c0_i32, %c0_i32_0 : i32, i32, i32
  }
}

</mosaic_0001>

<llo_original>
// kernel: tpu_custom_call.1
$region0: #{tpu_custom_call.1}
  #allocation0 [shape = 'u32[]', space=smem, size = 0x4, offset = 0x4, fixed_abs, tag = 'smem constant byte address 0x4 - core index']
  #allocation1 [shape = 'u32[144,128]{1,0:T(1,128)}', space=vmem, size = 0x12000, scoped, tag = 'internal scratch']
  %s0 = inlined_call_operand.hbm [shape: f32[2,8,256], index: 0, kind: input, shape index: {}]
  %s1 = inlined_call_operand.hbm [shape: f32[2,256], index: 1, kind: input, shape index: {}]
  %s2 = inlined_call_operand.vmem [shape: f32[8,8], index: 2, kind: input, shape index: {}]
  %s3 = inlined_call_operand.vmem [shape: f32[3,2], index: 3, kind: input, shape index: {}]
  %s4 = inlined_call_operand.vmem [shape: f32[8,8], index: 4, kind: input, shape index: {}]
  %s5 = inlined_call_operand.vmem [shape: f32[8,2], index: 5, kind: input, shape index: {}]
  %s6 = inlined_call_operand.vmem [shape: f32[2,8], index: 6, kind: input, shape index: {}]
  %s7 = inlined_call_operand.hbm [shape: f32[2,8,256], index: 7, kind: output, shape index: {}]
  %s8 = sld [smem:[#allocation0]]
  $region46: #{tpu_custom_call.1} parent=0
    _
  %s10 = ssub.s32 1, %s8
  %s11 = scalar_select 0, %s10, %s8
  $region1: #{tpu_custom_call.1} parent=0
    #allocation2 [shape = 'u8[16384]{0}', space=vmem, size = 0x4000, scoped, tag = 'input window, operand 0, single buffered']
    #allocation3 [shape = 's32[1]{0}', space=sflag, size = 0x4, scoped, tag = 'scoped memory for tpu_custom_call.1']
    #allocation4 [shape = 's32[1]{0}', space=sflag, size = 0x4, scoped, tag = 'scoped memory for tpu_custom_call.1']
    #allocation5 [shape = 'u8[2048]{0}', space=vmem, size = 0x800, scoped, tag = 'input window, operand 1, single buffered']
    #allocation6 [shape = 's32[1]{0}', space=sflag, size = 0x4, scoped, tag = 'scoped memory for tpu_custom_call.1']
    #allocation7 [shape = 'u8[16384]{0}', space=vmem, size = 0x4000, scoped, tag = 'output window, operand 0, single buffered']
    %12 = vsyncpa [#allocation3], 0
    %13 = vsyncpa [#allocation6], 0
    %14 = vsyncpa [#allocation4], 0
    // Predicated region
    $region2: #{tpu_custom_call.1} parent=1 // pred_check
      _
    $region3: #{tpu_custom_call.1} parent=1 // pred_check_branch
      %16 = sbr.rel (0) target = $region5
    $region4: #{tpu_custom_call.1} parent=1 // pred_region
      %s18 = ssub.s32 512, 512
      %19 = vsyncadd [#allocation3], %s18
      %s20 = sshll.u32 [#allocation2], 4
      %s21 = int_to_ptr.vmem [resolvable:$true] %s20
      %26 = dma.hbm_to_vmem [thread:$0]  %s0, 512, %s21, [#allocation3], 256, 256, 16
    $region5: #{tpu_custom_call.1} parent=1 // pred_fallthru
      _
    // Predicated region
    $region6: #{tpu_custom_call.1} parent=1 // pred_check
      _
    $region7: #{tpu_custom_call.1} parent=1 // pred_check_branch
      %28 = sbr.rel (0) target = $region9
    $region8: #{tpu_custom_call.1} parent=1 // pred_region
      %s30 = ssub.s32 64, 64
      %31 = vsyncadd [#allocation6], %s30
      %s33 = sshll.u32 [#allocation5], 4
      %s34 = int_to_ptr.vmem [resolvable:$true] %s33
      %36 = dma.hbm_to_vmem [thread:$0]  %s1, 64, %s34, [#allocation6]
    $region9: #{tpu_custom_call.1} parent=1 // pred_fallthru
      _
    // Predicated region
    $region10: #{tpu_custom_call.1} parent=1 // pred_check
      _
    $region11: #{tpu_custom_call.1} parent=1 // pred_check_branch
      %38 = sbr.rel (0) target = $region13
    $region12: #{tpu_custom_call.1} parent=1 // pred_region
      _
    $region13: #{tpu_custom_call.1} parent=1 // pred_fallthru
      _
    // Predicated region
    $region14: #{tpu_custom_call.1} parent=1 // pred_check
      _
    $region15: #{tpu_custom_call.1} parent=1 // pred_check_branch
      %40 = sbr.rel (0) target = $region17
    $region16: #{tpu_custom_call.1} parent=1 // pred_region
      _
    $region17: #{tpu_custom_call.1} parent=1 // pred_fallthru
      _
    // Predicated region
    $region18: #{tpu_custom_call.1} parent=1 // pred_check
      _
    $region19: #{tpu_custom_call.1} parent=1 // pred_check_branch
      %42 = sbr.rel (0) target = $region21
    $region20: #{tpu_custom_call.1} parent=1 // pred_region
      _
    $region21: #{tpu_custom_call.1} parent=1 // pred_fallthru
      _
    // Predicated region
    $region22: #{tpu_custom_call.1} parent=1 // pred_check
      _
    $region23: #{tpu_custom_call.1} parent=1 // pred_check_branch
      %44 = sbr.rel (0) target = $region25
    $region24: #{tpu_custom_call.1} parent=1 // pred_region
      _
    $region25: #{tpu_custom_call.1} parent=1 // pred_fallthru
      _
    // Predicated region
    $region26: #{tpu_custom_call.1} parent=1 // pred_check
      _
    $region27: #{tpu_custom_call.1} parent=1 // pred_check_branch
      %46 = sbr.rel (0) target = $region29
    $region28: #{tpu_custom_call.1} parent=1 // pred_region
      _
    $region29: #{tpu_custom_call.1} parent=1 // pred_fallthru
      _
    // Predicated region
    $region30: #{tpu_custom_call.1} parent=1 // pred_check
      _
    $region31: #{tpu_custom_call.1} parent=1 // pred_check_branch
      %48 = sbr.rel (0) target = $region33
    $region32: #{tpu_custom_call.1} parent=1 // pred_region
      %49 = dma.done [#allocation3], 512
    $region33: #{tpu_custom_call.1} parent=1 // pred_fallthru
      _
    // Predicated region
    $region34: #{tpu_custom_call.1} parent=1 // pred_check
      _
    $region35: #{tpu_custom_call.1} parent=1 // pred_check_branch
      %51 = sbr.rel (0) target = $region37
    $region36: #{tpu_custom_call.1} parent=1 // pred_region
      %52 = dma.done [#allocation6], 64
    $region37: #{tpu_custom_call.1} parent=1 // pred_fallthru
      _
    %v53 = vld [vmem:[#allocation2] sm:$0xff]
    %v54 = vld [vmem:[#allocation2 + $0x8] sm:$0xff]
    %v55 = vld [vmem:[#allocation2 + $0x10] sm:$0xff]
    %v56 = vld [vmem:[#allocation2 + $0x18] sm:$0xff]
    %v57 = vld [vmem:[#allocation5] sm:$0xf]
    %v58 = vld [vmem:[%s2] sm:$0xff]
    %v59 = vld [vmem:[%s3] sm:$0x7]
    %v60 = vmax.f32 %v53, %v54
    %61 = vmax.xlane.f32.xlu0 %v60
    %v62 = vpop.xlane.xlu0 %61
    %v63 = vmax.f32 %v55, %v56
    %64 = vmax.xlane.f32.xlu0 %v63
    %v65 = vpop.xlane.xlu0 %64
    %v67 = vlaneseq
    %v68 = vshrl.u32 %v67, 7
    %v69 = vsub.s32 0, %v68
    %v70 = vrot.slane %v57, %v69
    %v71 = vlaneseq
    %v72 = vshrl.u32 %v71, 7
    %v73 = vsub.s32 2, %v72
    %v74 = vrot.slane %v57, %v73
    %v77 = vlaneseq
    %v78 = vshrl.u32 %v77, 7
    %v79 = vsub.s32 0, %v78
    %v80 = vrot.slane %v70, %v79
    %v81 = vlaneseq
    %v82 = vshrl.u32 %v81, 7
    %v83 = vsub.s32 0, %v82
    %v84 = vrot.slane %v74, %v83
    %v85 = vmul.f32 %v53, %v80
    %v86 = vmul.f32 %v54, %v84
    %v87 = vmul.f32 %v55, %v80
    %v88 = vmul.f32 %v56, %v84
    %v89 = vadd.f32 %v85, %v86
    %90 = vadd.xlane.f32.xlu0 %v89
    %v91 = vpop.xlane.xlu0 %90
    %v92 = vadd.f32 %v87, %v88
    %93 = vadd.xlane.f32.xlu0 %v92
    %v94 = vpop.xlane.xlu0 %93
    %v95 = vlaneseq
    %v96 = vshrl.u32 %v95, 7
    %v97 = vsub.s32 1, %v96
    %v98 = vrot.slane %v57, %v97
    %v99 = vlaneseq
    %v100 = vshrl.u32 %v99, 7
    %v101 = vsub.s32 3, %v100
    %v102 = vrot.slane %v57, %v101
    %v105 = vlaneseq
    %v106 = vshrl.u32 %v105, 7
    %v107 = vsub.s32 1, %v106
    %v108 = vrot.slane %v98, %v107
    %v109 = vlaneseq
    %v110 = vshrl.u32 %v109, 7
    %v111 = vsub.s32 1, %v110
    %v112 = vrot.slane %v102, %v111
    %v113 = vmul.f32 %v53, %v108
    %v114 = vmul.f32 %v54, %v112
    %v115 = vmul.f32 %v55, %v108
    %v116 = vmul.f32 %v56, %v112
    %v117 = vadd.f32 %v113, %v114
    %118 = vadd.xlane.f32.xlu0 %v117
    %v119 = vpop.xlane.xlu0 %118
    %v120 = vadd.f32 %v115, %v116
    %121 = vadd.xlane.f32.xlu0 %v120
    %v122 = vpop.xlane.xlu0 %121
    %v123 = vlaneseq
    %v124 = vshrl.u32 %v123, 7
    %v125 = vsub.s32 6, %v124
    %v126 = vrot.slane %v58, %v125
    %v129 = vlaneseq
    %v130 = vand.u32 %v129, 127
    %v131 = vlaneseq
    %v132 = vshrl.u32 %v131, 7
    %v133 = vsub.s32 %v130, %v132
    %v134 = vrot.slane %v91, %v133
    %v135 = vlaneseq
    %v136 = vshrl.u32 %v135, 7
    %v137 = vsub.s32 %v130, %v136
    %v138 = vrot.slane %v94, %v137
    %vm139 = vcmask 1041409
    %v140 = vsel %vm139, %v138, %v134
    %v142 = vmul.f32 %v126, %v140
    %v143 = vlaneseq
    %v144 = vshrl.u32 %v143, 7
    %v145 = vsub.s32 7, %v144
    %v146 = vrot.slane %v58, %v145
    %v149 = vlaneseq
    %v150 = vshrl.u32 %v149, 7
    %v151 = vsub.s32 %v130, %v150
    %v152 = vrot.slane %v119, %v151
    %v153 = vlaneseq
    %v154 = vshrl.u32 %v153, 7
    %v155 = vsub.s32 %v130, %v154
    %v156 = vrot.slane %v122, %v155
    %v157 = vsel %vm139, %v156, %v152
    %v159 = vmul.f32 %v146, %v157
    %v160 = vadd.f32 %v142, %v159
    %v161 = vlaneseq
    %v162 = vshrl.u32 %v161, 7
    %v163 = vsub.s32 0, %v162
    %v164 = vrot.slane %v58, %v163
    %v167 = vlaneseq
    %v168 = vshrl.u32 %v167, 7
    %v169 = vsub.s32 %v130, %v168
    %v170 = vrot.slane %v62, %v169
    %v171 = vlaneseq
    %v172 = vshrl.u32 %v171, 7
    %v173 = vsub.s32 %v130, %v172
    %v174 = vrot.slane %v65, %v173
    %v175 = vsel %vm139, %v174, %v170
    %v177 = vmul.f32 %v164, %v175
    %v178 = vlaneseq
    %v179 = vshrl.u32 %v178, 7
    %v180 = vsub.s32 1, %v179
    %v181 = vrot.slane %v58, %v180
    %v182 = vmul.f32 %v181, %v160
    %v183 = vadd.f32 %v177, %v182
    %v184 = vld [vmem:[%s4] sm:$0xff]
    %v185 = vlaneseq
    %v186 = vshrl.u32 %v185, 7
    %v187 = vsub.s32 5, %v186
    %v188 = vrot.slane %v58, %v187
    %vm189 = vcmask 64512
    %v191 = vsel %vm189, %v183, 0
    %193 = vmatprep.subr.mxu0 0.0
    %194 = vmatpush1.msra.mxu0 %v184
    %195 = vmatprep.subr.mxu0 0.0
    %196 = vmatpush1.msra.mxu0 0.0
    %197 = vmatprep.subr.mxu0 0.0
    %198 = vmatpush1.msra.mxu0 0.0
    %199 = vmatprep.subr.mxu0 0.0
    %200 = vmatpush1.msra.mxu0 0.0
    %201 = vmatprep.subr.mxu0 0.0
    %202 = vmatpush1.msra.mxu0 0.0
    %203 = vmatprep.subr.mxu0 0.0
    %204 = vmatpush1.msra.mxu0 0.0
    %205 = vmatprep.subr.mxu0 0.0
    %206 = vmatpush1.msra.mxu0 0.0
    %207 = vmatprep.subr.mxu0 0.0
    %208 = vmatpush1.msra.mxu0 0.0
    %209 = vmatprep.subr.mxu0 0.0
    %210 = vmatpush1.msra.mxu0 0.0
    %211 = vmatprep.subr.mxu0 0.0
    %212 = vmatpush1.msra.mxu0 0.0
    %213 = vmatprep.subr.mxu0 0.0
    %214 = vmatpush1.msra.mxu0 0.0
    %215 = vmatprep.subr.mxu0 0.0
    %216 = vmatpush1.msra.mxu0 0.0
    %217 = vmatprep.subr.mxu0 0.0
    %218 = vmatpush1.msra.mxu0 0.0
    %219 = vmatprep.subr.mxu0 0.0
    %220 = vmatpush1.msra.mxu0 0.0
    %221 = vmatprep.subr.mxu0 0.0
    %222 = vmatpush1.msra.mxu0 0.0
    %223 = vmatprep.subr.mxu0 0.0
    %224 = vmatpush1.msra.mxu0 0.0
    %225 = vmatprep.subr.mxu0 0.0
    %226 = vmatpush1.msra.mxu0 0.0
    %227 = vmatprep.subr.mxu0 0.0
    %228 = vmatpush1.msra.mxu0 0.0
    %229 = vmatprep.subr.mxu0 0.0
    %230 = vmatpush1.msra.mxu0 0.0
    %231 = vmatprep.subr.mxu0 0.0
    %232 = vmatpush1.msra.mxu0 0.0
    %233 = vmatprep.subr.mxu0 0.0
    %234 = vmatpush1.msra.mxu0 0.0
    %235 = vmatprep.subr.mxu0 0.0
    %236 = vmatpush1.msra.mxu0 0.0
    %237 = vmatprep.subr.mxu0 0.0
    %238 = vmatpush1.msra.mxu0 0.0
    %239 = vmatprep.subr.mxu0 0.0
    %240 = vmatpush1.msra.mxu0 0.0
    %241 = vmatprep.subr.mxu0 0.0
    %242 = vmatpush1.msra.mxu0 0.0
    %243 = vmatprep.subr.mxu0 0.0
    %244 = vmatpush1.msra.mxu0 0.0
    %245 = vmatprep.subr.mxu0 0.0
    %246 = vmatpush1.msra.mxu0 0.0
    %247 = vmatprep.subr.mxu0 0.0
    %248 = vmatpush1.msra.mxu0 0.0
    %249 = vmatprep.subr.mxu0 0.0
    %250 = vmatpush1.msra.mxu0 0.0
    %251 = vmatprep.subr.mxu0 0.0
    %252 = vmatpush1.msra.mxu0 0.0
    %253 = vmatprep.subr.mxu0 0.0
    %254 = vmatpush1.msra.mxu0 0.0
    %255 = vmatprep.subr.mxu0 0.0
    %256 = vmatpush1.msra.mxu0 0.0
    %257 = vmatprep.mubr.f32.mxu0 0.0
    %258 = vmatmul.mubr.f32.gmra.mrb[0].mxu0 %v191
    %v259 = vpop.f32.mrb[0].mxu0
    %v260 = vadd.f32 %v188, %v259
    %v261 = vpop.f32.mrb[0].mxu0
    %262 = vdwg.mxu0
    %v263 = vadd.f32 %v183, %v260
    %vm264 = vcmask 58368
    %v265 = vsel %vm264, %v263, 0.0
    %266 = vadd.xlane.f32.xlu0 %v265
    %v267 = vpop.xlane.xlu0 %266
    %v268 = vrcp.pop 8.0
    %v269 = vmul.f32 %v267, %v268
    %v270 = vsub.f32 %v263, %v269
    %v271 = vmul.f32 %v270, %v270
    %v272 = vsel %vm264, %v271, 0.0
    %273 = vadd.xlane.f32.xlu0 %v272
    %v274 = vpop.xlane.xlu0 %273
    %v275 = vmul.f32 %v274, %v268
    %v276 = vadd.f32 %v275, 1e-05
    %v277 = vrsqrt.pop %v276
    %v278 = vmul.f32 %v270, %v277
    %v279 = vlaneseq
    %v280 = vshrl.u32 %v279, 7
    %v281 = vsub.s32 2, %v280
    %v282 = vrot.slane %v58, %v281
    %v283 = vmul.f32 %v278, %v282
    %v284 = vlaneseq
    %v285 = vshrl.u32 %v284, 7
    %v286 = vsub.s32 3, %v285
    %v287 = vrot.slane %v58, %v286
    %v288 = vadd.f32 %v283, %v287
    %v289 = vld [vmem:[%s5] sm:$0xff]
    %v290 = vlaneseq
    %v291 = vshrl.u32 %v290, 7
    %v292 = vsub.s32 0, %v291
    %v293 = vrot.slane %v59, %v292
    %v295 = vsel %vm189, %v288, 0
    %297 = vmatprep.subr.mxu0 0.0
    %298 = vmatpush1.msra.mxu0 %v289
    %299 = vmatprep.subr.mxu0 0.0
    %300 = vmatpush1.msra.mxu0 0.0
    %301 = vmatprep.subr.mxu0 0.0
    %302 = vmatpush1.msra.mxu0 0.0
    %303 = vmatprep.subr.mxu0 0.0
    %304 = vmatpush1.msra.mxu0 0.0
    %305 = vmatprep.subr.mxu0 0.0
    %306 = vmatpush1.msra.mxu0 0.0
    %307 = vmatprep.subr.mxu0 0.0
    %308 = vmatpush1.msra.mxu0 0.0
    %309 = vmatprep.subr.mxu0 0.0
    %310 = vmatpush1.msra.mxu0 0.0
    %311 = vmatprep.subr.mxu0 0.0
    %312 = vmatpush1.msra.mxu0 0.0
    %313 = vmatprep.subr.mxu0 0.0
    %314 = vmatpush1.msra.mxu0 0.0
    %315 = vmatprep.subr.mxu0 0.0
    %316 = vmatpush1.msra.mxu0 0.0
    %317 = vmatprep.subr.mxu0 0.0
    %318 = vmatpush1.msra.mxu0 0.0
    %319 = vmatprep.subr.mxu0 0.0
    %320 = vmatpush1.msra.mxu0 0.0
    %321 = vmatprep.subr.mxu0 0.0
    %322 = vmatpush1.msra.mxu0 0.0
    %323 = vmatprep.subr.mxu0 0.0
    %324 = vmatpush1.msra.mxu0 0.0
    %325 = vmatprep.subr.mxu0 0.0
    %326 = vmatpush1.msra.mxu0 0.0
    %327 = vmatprep.subr.mxu0 0.0
    %328 = vmatpush1.msra.mxu0 0.0
    %329 = vmatprep.subr.mxu0 0.0
    %330 = vmatpush1.msra.mxu0 0.0
    %331 = vmatprep.subr.mxu0 0.0
    %332 = vmatpush1.msra.mxu0 0.0
    %333 = vmatprep.subr.mxu0 0.0
    %334 = vmatpush1.msra.mxu0 0.0
    %335 = vmatprep.subr.mxu0 0.0
    %336 = vmatpush1.msra.mxu0 0.0
    %337 = vmatprep.subr.mxu0 0.0
    %338 = vmatpush1.msra.mxu0 0.0
    %339 = vmatprep.subr.mxu0 0.0
    %340 = vmatpush1.msra.mxu0 0.0
    %341 = vmatprep.subr.mxu0 0.0
    %342 = vmatpush1.msra.mxu0 0.0
    %343 = vmatprep.subr.mxu0 0.0
    %344 = vmatpush1.msra.mxu0 0.0
    %345 = vmatprep.subr.mxu0 0.0
    %346 = vmatpush1.msra.mxu0 0.0
    %347 = vmatprep.subr.mxu0 0.0
    %348 = vmatpush1.msra.mxu0 0.0
    %349 = vmatprep.subr.mxu0 0.0
    %350 = vmatpush1.msra.mxu0 0.0
    %351 = vmatprep.subr.mxu0 0.0
    %352 = vmatpush1.msra.mxu0 0.0
    %353 = vmatprep.subr.mxu0 0.0
    %354 = vmatpush1.msra.mxu0 0.0
    %355 = vmatprep.subr.mxu0 0.0
    %356 = vmatpush1.msra.mxu0 0.0
    %357 = vmatprep.subr.mxu0 0.0
    %358 = vmatpush1.msra.mxu0 0.0
    %359 = vmatprep.subr.mxu0 0.0
    %360 = vmatpush1.msra.mxu0 0.0
    %361 = vmatprep.mubr.f32.mxu0 0.0
    %362 = vmatmul.mubr.f32.gmra.mrb[0].mxu0 %v295
    %v363 = vpop.f32.mrb[0].mxu0
    %v364 = vadd.f32 %v293, %v363
    %v365 = vpop.f32.mrb[0].mxu0
    %366 = vdwg.mxu0
    %vm367 = vcmask 9216
    %v368 = vsel %vm367, %v364, 0.0
    %369 = vadd.xlane.f32.xlu0 %v368
    %v370 = vpop.xlane.xlu0 %369
    %v371 = vrcp.pop 2.0
    %v372 = vmul.f32 %v370, %v371
    %v373 = vsub.f32 %v364, %v372
    %v374 = vmul.f32 %v373, %v373
    %v375 = vsel %vm367, %v374, 0.0
    %376 = vadd.xlane.f32.xlu0 %v375
    %v377 = vpop.xlane.xlu0 %376
    %v378 = vmul.f32 %v377, %v371
    %v379 = vadd.f32 %v378, 1e-05
    %v380 = vrsqrt.pop %v379
    %v381 = vmul.f32 %v373, %v380
    %v382 = vlaneseq
    %v383 = vshrl.u32 %v382, 7
    %v384 = vsub.s32 1, %v383
    %v385 = vrot.slane %v59, %v384
    %v386 = vmul.f32 %v381, %v385
    %v387 = vlaneseq
    %v388 = vshrl.u32 %v387, 7
    %v389 = vsub.s32 2, %v388
    %v390 = vrot.slane %v59, %v389
    %v391 = vadd.f32 %v386, %v390
    %v392 = vmax.f32 %v391, 0.0
    %v393 = vld [vmem:[%s6] sm:$0x3]
    %v394 = vlaneseq
    %v395 = vshrl.u32 %v394, 7
    %v396 = vsub.s32 4, %v395
    %v397 = vrot.slane %v58, %v396
    %vm398 = vcmask 15360
    %v400 = vsel %vm398, %v392, 0
    %vm402 = vcmask 1041408
    %v404 = vsel %vm402, %v393, 0
    %406 = vmatprep.subr.mxu0 0.0
    %407 = vmatpush1.msra.mxu0 %v404
    %408 = vmatprep.subr.mxu0 0.0
    %409 = vmatpush1.msra.mxu0 0.0
    %410 = vmatprep.subr.mxu0 0.0
    %411 = vmatpush1.msra.mxu0 0.0
    %412 = vmatprep.subr.mxu0 0.0
    %413 = vmatpush1.msra.mxu0 0.0
    %414 = vmatprep.subr.mxu0 0.0
    %415 = vmatpush1.msra.mxu0 0.0
    %416 = vmatprep.subr.mxu0 0.0
    %417 = vmatpush1.msra.mxu0 0.0
    %418 = vmatprep.subr.mxu0 0.0
    %419 = vmatpush1.msra.mxu0 0.0
    %420 = vmatprep.subr.mxu0 0.0
    %421 = vmatpush1.msra.mxu0 0.0
    %422 = vmatprep.subr.mxu0 0.0
    %423 = vmatpush1.msra.mxu0 0.0
    %424 = vmatprep.subr.mxu0 0.0
    %425 = vmatpush1.msra.mxu0 0.0
    %426 = vmatprep.subr.mxu0 0.0
    %427 = vmatpush1.msra.mxu0 0.0
    %428 = vmatprep.subr.mxu0 0.0
    %429 = vmatpush1.msra.mxu0 0.0
    %430 = vmatprep.subr.mxu0 0.0
    %431 = vmatpush1.msra.mxu0 0.0
    %432 = vmatprep.subr.mxu0 0.0
    %433 = vmatpush1.msra.mxu0 0.0
    %434 = vmatprep.subr.mxu0 0.0
    %435 = vmatpush1.msra.mxu0 0.0
    %436 = vmatprep.subr.mxu0 0.0
    %437 = vmatpush1.msra.mxu0 0.0
    %438 = vmatprep.subr.mxu0 0.0
    %439 = vmatpush1.msra.mxu0 0.0
    %440 = vmatprep.subr.mxu0 0.0
    %441 = vmatpush1.msra.mxu0 0.0
    %442 = vmatprep.subr.mxu0 0.0
    %443 = vmatpush1.msra.mxu0 0.0
    %444 = vmatprep.subr.mxu0 0.0
    %445 = vmatpush1.msra.mxu0 0.0
    %446 = vmatprep.subr.mxu0 0.0
    %447 = vmatpush1.msra.mxu0 0.0
    %448 = vmatprep.subr.mxu0 0.0
    %449 = vmatpush1.msra.mxu0 0.0
    %450 = vmatprep.subr.mxu0 0.0
    %451 = vmatpush1.msra.mxu0 0.0
    %452 = vmatprep.subr.mxu0 0.0
    %453 = vmatpush1.msra.mxu0 0.0
    %454 = vmatprep.subr.mxu0 0.0
    %455 = vmatpush1.msra.mxu0 0.0
    %456 = vmatprep.subr.mxu0 0.0
    %457 = vmatpush1.msra.mxu0 0.0
    %458 = vmatprep.subr.mxu0 0.0
    %459 = vmatpush1.msra.mxu0 0.0
    %460 = vmatprep.subr.mxu0 0.0
    %461 = vmatpush1.msra.mxu0 0.0
    %462 = vmatprep.subr.mxu0 0.0
    %463 = vmatpush1.msra.mxu0 0.0
    %464 = vmatprep.subr.mxu0 0.0
    %465 = vmatpush1.msra.mxu0 0.0
    %466 = vmatprep.subr.mxu0 0.0
    %467 = vmatpush1.msra.mxu0 0.0
    %468 = vmatprep.subr.mxu0 0.0
    %469 = vmatpush1.msra.mxu0 0.0
    %470 = vmatprep.mubr.f32.mxu0 0.0
    %471 = vmatmul.mubr.f32.gmra.mrb[0].mxu0 %v400
    %v472 = vpop.f32.mrb[0].mxu0
    %v473 = vadd.f32 %v397, %v472
    %v474 = vpop.f32.mrb[0].mxu0
    %475 = vdwg.mxu0
    %v476 = vlaneseq
    %v477 = vshrl.u32 %v476, 7
    %v478 = vsub.s32 0, %v477
    %v479 = vrot.slane %v473, %v478
    %481 = vbcast.lane.b32.xlu0 %v479, 256
    %v482 = vpop.permute.xlu0 %481
    %v483 = vlaneseq
    %v484 = vshrl.u32 %v483, 7
    %v485 = vsub.s32 1, %v484
    %v486 = vrot.slane %v473, %v485
    %488 = vbcast.lane.b32.xlu0 %v486, 256
    %v489 = vpop.permute.xlu0 %488
    %v490 = vadd.f32 %v53, %v482
    %v491 = vadd.f32 %v54, %v482
    %v492 = vadd.f32 %v55, %v489
    %v493 = vadd.f32 %v56, %v489
    %494 = vst [vmem:[#allocation7] sm:$0xff] %v490
    %495 = vst [vmem:[#allocation7 + $0x8] sm:$0xff] %v491
    %496 = vst [vmem:[#allocation7 + $0x10] sm:$0xff] %v492
    %497 = vst [vmem:[#allocation7 + $0x18] sm:$0xff] %v493
    // Predicated region
    $region38: #{tpu_custom_call.1} parent=1 // pred_check
      _
    $region39: #{tpu_custom_call.1} parent=1 // pred_check_branch
      %499 = sbr.rel (0) target = $region41
    $region40: #{tpu_custom_call.1} parent=1 // pred_region
      %s501 = ssub.s32 512, 512
      %502 = vsyncadd [#allocation4], %s501
      %s503 = sshll.u32 [#allocation7], 4
      %s504 = int_to_ptr.vmem [resolvable:$true] %s503
      %509 = dma.vmem_to_hbm [thread:$0]  %s504, 512, %s7, [#allocation4], 256, 256, 16
    $region41: #{tpu_custom_call.1} parent=1 // pred_fallthru
      _
    // Predicated region
    $region42: #{tpu_custom_call.1} parent=1 // pred_check
      _
    $region43: #{tpu_custom_call.1} parent=1 // pred_check_branch
      %511 = sbr.rel (0) target = $region45
    $region44: #{tpu_custom_call.1} parent=1 // pred_region
      %512 = dma.done [#allocation4], 512
    $region45: #{tpu_custom_call.1} parent=1 // pred_fallthru
      _
    %513 = vsyncpa [#allocation3], 1
    %514 = vsyncpa [#allocation6], 1
    %515 = vsyncpa [#allocation4], 1

</llo_original>
